<compile_context>
chip_gen: v6e
topology: v6e:2x2x1
jax: 0.10.0
libtpu: 0.0.40
codegen_flags: <defaults>
</compile_context>

<pallas_src>
import jax
import jax.numpy as jnp
from jax.experimental import pallas as pl
from jax.experimental.pallas import tpu as pltpu


# -----------------------------------------------------------------------------
# Graph normalization glue (replicates PyG ChebConv __norm__ with lambda_max=2.0)
# -----------------------------------------------------------------------------
def build_lhat(edge_index, num_nodes):
    row, col = edge_index
    w = jnp.ones(row.shape[0], dtype=jnp.float32)
    deg = jnp.zeros((num_nodes,), jnp.float32).at[row].add(w)
    dinv = jnp.where(deg > 0, 1.0 / jnp.sqrt(deg), 0.0)
    vals = -dinv[row] * w * dinv[col]            # (2/lambda_max)*L - I  with lambda_max=2
    lhat = jnp.zeros((num_nodes, num_nodes), jnp.float32).at[row, col].add(vals)
    return lhat                                   # zero diagonal


# -----------------------------------------------------------------------------
# Pallas kernel: full forward for one batch chunk of B samples (laid out on lanes)
# -----------------------------------------------------------------------------
def make_kernel(*, num_layers, k_hops, num_params):
    bf = jnp.bfloat16
    f32 = jnp.float32

    def kernel(x_ref, lhat_ref, *refs):
        params = refs[:num_params]
        out_ref = refs[num_params]

        lhat = lhat_ref[...]                      # (N, N)    bf16
        h = x_ref[...]                            # (N, B*F)  f32

        p = 0
        s_acc = None                              # (N, B) f32 readout accumulator (vregs)
        for _layer in range(num_layers):
            # ---- ChebConv: per-hop fused (block-diag over the batch) weight matmuls ----
            t0 = h
            acc = jnp.dot(t0.astype(bf), params[p][...], preferred_element_type=f32)
            p += 1
            t1 = None
            if k_hops > 1:
                t1 = jnp.dot(lhat, t0.astype(bf), preferred_element_type=f32)
                acc = acc + jnp.dot(t1.astype(bf), params[p][...],
                                    preferred_element_type=f32)
                p += 1
            for _k in range(2, k_hops):
                t2 = 2.0 * jnp.dot(lhat, t1.astype(bf), preferred_element_type=f32) - t0
                acc = acc + jnp.dot(t2.astype(bf), params[p][...],
                                    preferred_element_type=f32)
                p += 1
                t0, t1 = t1, t2
            bias = params[p][...]                 # (1, B*H) f32 (tiled per sample)
            p += 1
            h = jnp.maximum(acc + bias, 0.0)      # (N, B*H) f32, bias + ReLU in f32

            # ---- on-the-fly 'cat' readout:  s_acc[n,b] += sum_h h[n, b*H+h] * fc_v[h, layer]
            r = jnp.dot(h.astype(bf), params[p][...], preferred_element_type=f32)  # (N, B)
            p += 1
            s_acc = r if s_acc is None else s_acc + r

        lin1_w = params[p][...]; p += 1           # (hidden_fc, N)  bf16 (un-transposed)
        lin1_b = params[p][...]; p += 1           # (hidden_fc, 1)  f32  (fc bias folded in)
        lin2_w = params[p][...]; p += 1           # (C, hidden_fc)  bf16
        lin2_b = params[p][...]; p += 1           # (C, 1)          f32

        h1 = jnp.dot(lin1_w, s_acc.astype(bf), preferred_element_type=f32) + lin1_b
        h1 = jnp.maximum(h1, 0.0)                 # (hidden_fc, B)
        # TODO(synk): dropout(p=0.5) -> eval-mode identity.
        logits = jnp.dot(lin2_w, h1.astype(bf), preferred_element_type=f32) + lin2_b

        # log_softmax over the class axis (sublanes); columns = samples
        m = jnp.max(logits, axis=0, keepdims=True)
        z = logits - m
        lse = jnp.log(jnp.sum(jnp.exp(z), axis=0, keepdims=True))
        out_ref[...] = z - lse                    # (C, B)

    return kernel


# -----------------------------------------------------------------------------
# Wrapper: layout plumbing + parameter folding + pallas_call
# -----------------------------------------------------------------------------
def cheb_model_forward(x, lhat, conv_params, fc_w, fc_b, lin1_w, lin1_b, lin2_w, lin2_b,
                       *, batch_block=None):
    bs, n_nodes, n_feat = x.shape
    num_layers = len(conv_params)
    k_hops = len(conv_params[0][0])
    hidden_gcn = conv_params[0][0][0].shape[1]
    hidden_fc, n_genes = lin1_w.shape
    n_classes = lin2_w.shape[0]
    assert n_genes == n_nodes, "lin1 expects one scalar per graph node"

    # batch_block=None -> full batch fusion (one grid step).  For real sizes choose B so
    # B*hidden_gcn >= 128 (v5e) / 256 (v6e, v7x); on v7x use ceil(bs/2) only when MXU-bound.
    B = bs if batch_block is None else int(batch_block)
    num_chunks = pl.cdiv(bs, B)
    bs_p = num_chunks * B

    bf = jnp.bfloat16
    f32 = jnp.float32

    # ---- input layout: (num_chunks, N, B*F), batch x features on the lane axis ----
    xp = x if bs_p == bs else jnp.pad(x, ((0, bs_p - bs), (0, 0), (0, 0)))
    x_r = (xp.astype(f32)
             .reshape(num_chunks, B, n_nodes, n_feat)
             .transpose(0, 2, 1, 3)
             .reshape(num_chunks, n_nodes, B * n_feat))

    lhat_bf = lhat.astype(bf)

    def blockdiag(w):                      # (in, out) -> (B*in, B*out), per-sample blocks
        return jnp.kron(jnp.eye(B, dtype=w.dtype), w)

    # 'cat' interleave: flattened feature index = h * num_layers + l
    fc_v = fc_w.reshape(hidden_gcn, num_layers)

    params = []
    for layer, (ws, b) in enumerate(conv_params):
        for wk in ws:                                                     # one kron per hop
            params.append(blockdiag(wk).astype(bf))                      # (B*in, B*H)
        params.append(jnp.tile(jnp.asarray(b).reshape(1, -1), (1, B)).astype(f32))  # (1,B*H)
        params.append(blockdiag(fc_v[:, layer:layer + 1]).astype(bf))    # (B*H, B) readout

    params.append(lin1_w.astype(bf))                                     # (hidden_fc, N)
    # fold fc bias through lin1 (exact in eval mode: no dropout between fc and lin1)
    lin1_b_eff = lin1_b + fc_b[0] * jnp.sum(lin1_w, axis=1)
    params.append(lin1_b_eff.reshape(hidden_fc, 1).astype(f32))
    params.append(lin2_w.astype(bf))                                     # (C, hidden_fc)
    params.append(lin2_b.reshape(n_classes, 1).astype(f32))

    in_specs = [
        pl.BlockSpec((None, n_nodes, B * n_feat), lambda c: (c, 0, 0)),  # x: one chunk/step
        pl.BlockSpec((n_nodes, n_nodes), lambda c: (0, 0)),              # lhat: shared
    ]
    for prm in params:                                                   # full-array blocks
        in_specs.append(pl.BlockSpec(prm.shape, lambda c: (0, 0)))

    # Lane-dense single output buffer when the (C, B) block is layout-legal in it.
    flat_out = (num_chunks == 1) or (B % 128 == 0)
    if flat_out:
        out_shape = jax.ShapeDtypeStruct((n_classes, bs_p), f32)
        out_spec = pl.BlockSpec((n_classes, B), lambda c: (0, c))
    else:
        out_shape = jax.ShapeDtypeStruct((num_chunks, n_classes, B), f32)
        out_spec = pl.BlockSpec((None, n_classes, B), lambda c: (c, 0, 0))

    # ---- explicit VMEM budget: blocks (double-buffered) + activation temps + margin ----
    block_bytes = (n_nodes * B * n_feat * 4                               # x chunk (f32)
                   + lhat_bf.size * lhat_bf.dtype.itemsize                # lhat (bf16)
                   + sum(int(p.size) * p.dtype.itemsize for p in params)  # weights/biases
                   + n_classes * B * 4)                                   # output chunk
    act_bytes = 6 * n_nodes * B * max(n_feat, hidden_gcn) * 4             # t0/t1/acc/h/s_acc
    vmem_limit = int(min(2 * block_bytes + act_bytes + (8 << 20), 100 * 1024 * 1024))

    kernel = make_kernel(num_layers=num_layers, k_hops=k_hops, num_params=len(params))

    out = pl.pallas_call(
        kernel,
        out_shape=out_shape,
        grid=(num_chunks,),
        in_specs=in_specs,
        out_specs=out_spec,
        compiler_params=pltpu.CompilerParams(
            dimension_semantics=("parallel",),
            vmem_limit_bytes=vmem_limit),
    )(x_r, lhat_bf, *params)

    if flat_out:
        return out.T[:bs]                                                 # (bs, C)
    return out.transpose(0, 2, 1).reshape(bs_p, n_classes)[:bs]


# -----------------------------------------------------------------------------
# Pure-JAX reference (direct port of the torch forward, f32, for validation)
# -----------------------------------------------------------------------------
def reference_forward(x, lhat, conv_params, fc_w, fc_b, lin1_w, lin1_b, lin2_w, lin2_b,
                      *, num_layers, k_hops):
    def cheb(h, ws, b):
        tx0 = h
        out = jnp.einsum('bnf,fo->bno', tx0, ws[0])
        tx1 = None
        if k_hops > 1:
            tx1 = jnp.einsum('ij,bjf->bif', lhat, h)
            out = out + jnp.einsum('bnf,fo->bno', tx1, ws[1])
        for k in range(2, k_hops):
            tx2 = 2.0 * jnp.einsum('ij,bjf->bif', lhat, tx1) - tx0
            out = out + jnp.einsum('bnf,fo->bno', tx2, ws[k])
            tx0, tx1 = tx1, tx2
        return out + b

    h = x
    xs = []
    for (ws, b) in conv_params:
        h = jax.nn.relu(cheb(h, ws, b))
        xs.append(h)
    hcat = jnp.stack(xs, axis=-1).reshape(x.shape[0], x.shape[1], -1)   # 'cat' interleave
    s = jnp.einsum('bnk,ok->bno', hcat, fc_w) + fc_b                    # (bs, N, 1)
    s = s[..., 0]                                                       # (bs, N)
    h1 = jax.nn.relu(s @ lin1_w.T + lin1_b)                             # (bs, hidden_fc)
    logits = h1 @ lin2_w.T + lin2_b                                     # (bs, n_classes)
    return jax.nn.log_softmax(logits, axis=-1)


# -----------------------------------------------------------------------------
# Main
# -----------------------------------------------------------------------------
if __name__ == "__main__":
    bs = 2
    n_genes = 16          # = num_nodes (lin1 ties n_genes to the node count)
    n_features = 4
    hidden_gcn = 8
    hidden_fc = 32
    n_classes = 3
    num_layers = 2
    k_hops = 2

    key = jax.random.PRNGKey(0)
    keys = iter(jax.random.split(key, 64))

    # Deterministic ring graph (undirected).
    src = jnp.arange(n_genes, dtype=jnp.int32)
    dst = (src + 1) % n_genes
    edge_index = jnp.stack([jnp.concatenate([src, dst]), jnp.concatenate([dst, src])])
    lhat = build_lhat(edge_index, n_genes)

    def init(shape):
        return 0.1 * jax.random.normal(next(keys), shape, dtype=jnp.float32)

    # ChebConv parameters: per layer, K weight matrices (in, out) + one shared bias.
    conv_params = []
    in_dim = n_features
    for _ in range(num_layers):
        ws = [init((in_dim, hidden_gcn)) for _ in range(k_hops)]
        b = init((1, hidden_gcn))
        conv_params.append((ws, b))
        in_dim = hidden_gcn

    # Readout / MLP head parameters (torch Linear conventions: weight is (out, in)).
    fc_w = init((1, num_layers * hidden_gcn))
    fc_b = init((1,))
    lin1_w = init((hidden_fc, n_genes))
    lin1_b = init((hidden_fc,))
    lin2_w = init((n_classes, hidden_fc))
    lin2_b = init((n_classes,))

    x = jax.random.normal(next(keys), (bs, n_genes, n_features), dtype=jnp.float32)

    out = cheb_model_forward(x, lhat, conv_params, fc_w, fc_b, lin1_w, lin1_b,
                             lin2_w, lin2_b)
    out = jax.block_until_ready(out)

    ref = reference_forward(x, lhat, conv_params, fc_w, fc_b, lin1_w, lin1_b,
                            lin2_w, lin2_b, num_layers=num_layers, k_hops=k_hops)
    assert out.shape == (bs, n_classes)
    assert jnp.allclose(out, ref, atol=2e-2, rtol=2e-2), (out, ref)

    print("KERNEL_OK")
</pallas_src>

<mosaic_0001>
module attributes {stable_mosaic.version = 11 : i64} {
  func.func @kernel(%arg0: i32, %arg1: memref<1x16x8xf32, #tpu.memory_space<vmem>>, %arg2: memref<16x16xbf16, #tpu.memory_space<vmem>>, %arg3: memref<8x16xbf16, #tpu.memory_space<vmem>>, %arg4: memref<8x16xbf16, #tpu.memory_space<vmem>>, %arg5: memref<1x16xf32, #tpu.memory_space<vmem>>, %arg6: memref<16x2xbf16, #tpu.memory_space<vmem>>, %arg7: memref<16x16xbf16, #tpu.memory_space<vmem>>, %arg8: memref<16x16xbf16, #tpu.memory_space<vmem>>, %arg9: memref<1x16xf32, #tpu.memory_space<vmem>>, %arg10: memref<16x2xbf16, #tpu.memory_space<vmem>>, %arg11: memref<32x16xbf16, #tpu.memory_space<vmem>>, %arg12: memref<32x1xf32, #tpu.memory_space<vmem>>, %arg13: memref<3x32xbf16, #tpu.memory_space<vmem>>, %arg14: memref<3x1xf32, #tpu.memory_space<vmem>>, %arg15: memref<3x2xf32, #tpu.memory_space<vmem>>) attributes {dimension_semantics = [#tpu.dimension_semantics<parallel>], iteration_bounds = array<i64: 1>, scalar_prefetch = 0 : i64, scratch_operands = 0 : i64, tpu.core_type = #tpu.core_type<tc>, window_params = [{transform_indices = @transform_0, window_bounds = array<i64: 1, 16, 8>}, {pipeline_mode = #tpu.pipeline_mode<synchronous>, transform_indices = @transform_1, window_bounds = array<i64: 16, 16>}, {pipeline_mode = #tpu.pipeline_mode<synchronous>, transform_indices = @transform_2, window_bounds = array<i64: 8, 16>}, {pipeline_mode = #tpu.pipeline_mode<synchronous>, transform_indices = @transform_3, window_bounds = array<i64: 8, 16>}, {pipeline_mode = #tpu.pipeline_mode<synchronous>, transform_indices = @transform_4, window_bounds = array<i64: 1, 16>}, {pipeline_mode = #tpu.pipeline_mode<synchronous>, transform_indices = @transform_5, window_bounds = array<i64: 16, 2>}, {pipeline_mode = #tpu.pipeline_mode<synchronous>, transform_indices = @transform_6, window_bounds = array<i64: 16, 16>}, {pipeline_mode = #tpu.pipeline_mode<synchronous>, transform_indices = @transform_7, window_bounds = array<i64: 16, 16>}, {pipeline_mode = #tpu.pipeline_mode<synchronous>, transform_indices = @transform_8, window_bounds = array<i64: 1, 16>}, {pipeline_mode = #tpu.pipeline_mode<synchronous>, transform_indices = @transform_9, window_bounds = array<i64: 16, 2>}, {pipeline_mode = #tpu.pipeline_mode<synchronous>, transform_indices = @transform_10, window_bounds = array<i64: 32, 16>}, {pipeline_mode = #tpu.pipeline_mode<synchronous>, transform_indices = @transform_11, window_bounds = array<i64: 32, 1>}, {pipeline_mode = #tpu.pipeline_mode<synchronous>, transform_indices = @transform_12, window_bounds = array<i64: 3, 32>}, {pipeline_mode = #tpu.pipeline_mode<synchronous>, transform_indices = @transform_13, window_bounds = array<i64: 3, 1>}, {transform_indices = @transform_14, window_bounds = array<i64: 3, 2>}]} {
    %c0 = arith.constant 0 : index
    %c0_0 = arith.constant 0 : index
    %0 = vector.load %arg2[%c0, %c0_0] : memref<16x16xbf16, #tpu.memory_space<vmem>>, vector<16x16xbf16>
    %c0_1 = arith.constant 0 : index
    %c0_2 = arith.constant 0 : index
    %c0_3 = arith.constant 0 : index
    %1 = vector.load %arg1[%c0_1, %c0_2, %c0_3] : memref<1x16x8xf32, #tpu.memory_space<vmem>>, vector<1x16x8xf32>
    %2 = vector.shape_cast %1 : vector<1x16x8xf32> to vector<16x8xf32>
    %3 = arith.truncf %2 : vector<16x8xf32> to vector<16x8xbf16>
    %c0_4 = arith.constant 0 : index
    %c0_5 = arith.constant 0 : index
    %4 = vector.load %arg3[%c0_4, %c0_5] : memref<8x16xbf16, #tpu.memory_space<vmem>>, vector<8x16xbf16>
    %cst = arith.constant dense<0.000000e+00> : vector<16x16xf32>
    %5 = tpu.matmul %3, %4, %cst {dimension_numbers = #tpu.dot_dimension_numbers<[1], [0], [0], [1], [0, 0, 1, 1], [], []>} : vector<16x8xbf16>, vector<8x16xbf16>, vector<16x16xf32> -> vector<16x16xf32>
    %6 = arith.truncf %2 : vector<16x8xf32> to vector<16x8xbf16>
    %cst_6 = arith.constant dense<0.000000e+00> : vector<16x8xf32>
    %7 = tpu.matmul %0, %6, %cst_6 {dimension_numbers = #tpu.dot_dimension_numbers<[1], [0], [0], [1], [0, 0, 1, 1], [], []>} : vector<16x16xbf16>, vector<16x8xbf16>, vector<16x8xf32> -> vector<16x8xf32>
    %8 = arith.truncf %7 : vector<16x8xf32> to vector<16x8xbf16>
    %c0_7 = arith.constant 0 : index
    %c0_8 = arith.constant 0 : index
    %9 = vector.load %arg4[%c0_7, %c0_8] : memref<8x16xbf16, #tpu.memory_space<vmem>>, vector<8x16xbf16>
    %cst_9 = arith.constant dense<0.000000e+00> : vector<16x16xf32>
    %10 = tpu.matmul %8, %9, %cst_9 {dimension_numbers = #tpu.dot_dimension_numbers<[1], [0], [0], [1], [0, 0, 1, 1], [], []>} : vector<16x8xbf16>, vector<8x16xbf16>, vector<16x16xf32> -> vector<16x16xf32>
    %11 = arith.addf %5, %10 : vector<16x16xf32>
    %c0_10 = arith.constant 0 : index
    %c0_11 = arith.constant 0 : index
    %12 = vector.load %arg5[%c0_10, %c0_11] : memref<1x16xf32, #tpu.memory_space<vmem>>, vector<1x16xf32>
    %13 = vector.broadcast %12 : vector<1x16xf32> to vector<16x16xf32>
    %14 = arith.addf %11, %13 : vector<16x16xf32>
    %cst_12 = arith.constant 0.000000e+00 : f32
    %15 = vector.broadcast %cst_12 : f32 to vector<16x16xf32>
    %16 = arith.maximumf %14, %15 : vector<16x16xf32>
    %17 = arith.truncf %16 : vector<16x16xf32> to vector<16x16xbf16>
    %c0_13 = arith.constant 0 : index
    %c0_14 = arith.constant 0 : index
    %18 = vector.load %arg6[%c0_13, %c0_14] : memref<16x2xbf16, #tpu.memory_space<vmem>>, vector<16x2xbf16>
    %cst_15 = arith.constant dense<0.000000e+00> : vector<16x2xf32>
    %19 = tpu.matmul %17, %18, %cst_15 {dimension_numbers = #tpu.dot_dimension_numbers<[1], [0], [0], [1], [0, 0, 1, 1], [], []>} : vector<16x16xbf16>, vector<16x2xbf16>, vector<16x2xf32> -> vector<16x2xf32>
    %20 = arith.truncf %16 : vector<16x16xf32> to vector<16x16xbf16>
    %c0_16 = arith.constant 0 : index
    %c0_17 = arith.constant 0 : index
    %21 = vector.load %arg7[%c0_16, %c0_17] : memref<16x16xbf16, #tpu.memory_space<vmem>>, vector<16x16xbf16>
    %cst_18 = arith.constant dense<0.000000e+00> : vector<16x16xf32>
    %22 = tpu.matmul %20, %21, %cst_18 {dimension_numbers = #tpu.dot_dimension_numbers<[1], [0], [0], [1], [0, 0, 1, 1], [], []>} : vector<16x16xbf16>, vector<16x16xbf16>, vector<16x16xf32> -> vector<16x16xf32>
    %23 = arith.truncf %16 : vector<16x16xf32> to vector<16x16xbf16>
    %cst_19 = arith.constant dense<0.000000e+00> : vector<16x16xf32>
    %24 = tpu.matmul %0, %23, %cst_19 {dimension_numbers = #tpu.dot_dimension_numbers<[1], [0], [0], [1], [0, 0, 1, 1], [], []>} : vector<16x16xbf16>, vector<16x16xbf16>, vector<16x16xf32> -> vector<16x16xf32>
    %25 = arith.truncf %24 : vector<16x16xf32> to vector<16x16xbf16>
    %c0_20 = arith.constant 0 : index
    %c0_21 = arith.constant 0 : index
    %26 = vector.load %arg8[%c0_20, %c0_21] : memref<16x16xbf16, #tpu.memory_space<vmem>>, vector<16x16xbf16>
    %cst_22 = arith.constant dense<0.000000e+00> : vector<16x16xf32>
    %27 = tpu.matmul %25, %26, %cst_22 {dimension_numbers = #tpu.dot_dimension_numbers<[1], [0], [0], [1], [0, 0, 1, 1], [], []>} : vector<16x16xbf16>, vector<16x16xbf16>, vector<16x16xf32> -> vector<16x16xf32>
    %28 = arith.addf %22, %27 : vector<16x16xf32>
    %c0_23 = arith.constant 0 : index
    %c0_24 = arith.constant 0 : index
    %29 = vector.load %arg9[%c0_23, %c0_24] : memref<1x16xf32, #tpu.memory_space<vmem>>, vector<1x16xf32>
    %30 = vector.broadcast %29 : vector<1x16xf32> to vector<16x16xf32>
    %31 = arith.addf %28, %30 : vector<16x16xf32>
    %cst_25 = arith.constant 0.000000e+00 : f32
    %32 = vector.broadcast %cst_25 : f32 to vector<16x16xf32>
    %33 = arith.maximumf %31, %32 : vector<16x16xf32>
    %34 = arith.truncf %33 : vector<16x16xf32> to vector<16x16xbf16>
    %c0_26 = arith.constant 0 : index
    %c0_27 = arith.constant 0 : index
    %35 = vector.load %arg10[%c0_26, %c0_27] : memref<16x2xbf16, #tpu.memory_space<vmem>>, vector<16x2xbf16>
    %cst_28 = arith.constant dense<0.000000e+00> : vector<16x2xf32>
    %36 = tpu.matmul %34, %35, %cst_28 {dimension_numbers = #tpu.dot_dimension_numbers<[1], [0], [0], [1], [0, 0, 1, 1], [], []>} : vector<16x16xbf16>, vector<16x2xbf16>, vector<16x2xf32> -> vector<16x2xf32>
    %37 = arith.addf %19, %36 : vector<16x2xf32>
    %c0_29 = arith.constant 0 : index
    %c0_30 = arith.constant 0 : index
    %38 = vector.load %arg11[%c0_29, %c0_30] : memref<32x16xbf16, #tpu.memory_space<vmem>>, vector<32x16xbf16>
    %c0_31 = arith.constant 0 : index
    %c0_32 = arith.constant 0 : index
    %39 = vector.load %arg12[%c0_31, %c0_32] : memref<32x1xf32, #tpu.memory_space<vmem>>, vector<32x1xf32>
    %c0_33 = arith.constant 0 : index
    %c0_34 = arith.constant 0 : index
    %40 = vector.load %arg13[%c0_33, %c0_34] : memref<3x32xbf16, #tpu.memory_space<vmem>>, vector<3x32xbf16>
    %c0_35 = arith.constant 0 : index
    %c0_36 = arith.constant 0 : index
    %41 = vector.load %arg14[%c0_35, %c0_36] : memref<3x1xf32, #tpu.memory_space<vmem>>, vector<3x1xf32>
    %42 = arith.truncf %37 : vector<16x2xf32> to vector<16x2xbf16>
    %cst_37 = arith.constant dense<0.000000e+00> : vector<32x2xf32>
    %43 = tpu.matmul %38, %42, %cst_37 {dimension_numbers = #tpu.dot_dimension_numbers<[1], [0], [0], [1], [0, 0, 1, 1], [], []>} : vector<32x16xbf16>, vector<16x2xbf16>, vector<32x2xf32> -> vector<32x2xf32>
    %44 = vector.broadcast %39 : vector<32x1xf32> to vector<32x2xf32>
    %45 = arith.addf %43, %44 : vector<32x2xf32>
    %cst_38 = arith.constant 0.000000e+00 : f32
    %46 = vector.broadcast %cst_38 : f32 to vector<32x2xf32>
    %47 = arith.maximumf %45, %46 : vector<32x2xf32>
    %48 = arith.truncf %47 : vector<32x2xf32> to vector<32x2xbf16>
    %cst_39 = arith.constant dense<0.000000e+00> : vector<3x2xf32>
    %49 = tpu.matmul %40, %48, %cst_39 {dimension_numbers = #tpu.dot_dimension_numbers<[1], [0], [0], [1], [0, 0, 1, 1], [], []>} : vector<3x32xbf16>, vector<32x2xbf16>, vector<3x2xf32> -> vector<3x2xf32>
    %50 = vector.broadcast %41 : vector<3x1xf32> to vector<3x2xf32>
    %51 = arith.addf %49, %50 : vector<3x2xf32>
    %cst_40 = arith.constant dense<0xFF800000> : vector<2xf32>
    %52 = vector.multi_reduction <maximumf>, %51, %cst_40 [0] : vector<3x2xf32> to vector<2xf32>
    %53 = vector.shape_cast %52 : vector<2xf32> to vector<1x2xf32>
    %54 = vector.broadcast %53 : vector<1x2xf32> to vector<3x2xf32>
    %55 = arith.subf %51, %54 : vector<3x2xf32>
    %56 = math.exp %55 : vector<3x2xf32>
    %cst_41 = arith.constant dense<0.000000e+00> : vector<2xf32>
    %57 = vector.multi_reduction <add>, %56, %cst_41 [0] : vector<3x2xf32> to vector<2xf32>
    %58 = vector.shape_cast %57 : vector<2xf32> to vector<1x2xf32>
    %59 = math.log %58 : vector<1x2xf32>
    %60 = vector.broadcast %59 : vector<1x2xf32> to vector<3x2xf32>
    %61 = arith.subf %55, %60 : vector<3x2xf32>
    %c0_42 = arith.constant 0 : index
    %c0_43 = arith.constant 0 : index
    %62 = vector.load %arg15[%c0_42, %c0_43] : memref<3x2xf32, #tpu.memory_space<vmem>>, vector<3x2xf32>
    tpu.vector_store %arg15[%c0_42, %c0_43], %61 {strides = array<i32>} : memref<3x2xf32, #tpu.memory_space<vmem>>, vector<3x2xf32>,
    return
  }
  func.func @transform_0(%arg0: i32) -> (i32, i32, i32) {
    %c0_i32 = arith.constant 0 : i32
    %c0_i32_0 = arith.constant 0 : i32
    %c0_i32_1 = arith.constant 0 : i32
    return %arg0, %c0_i32, %c0_i32_0 : i32, i32, i32
  }
  func.func @transform_1(%arg0: i32) -> (i32, i32) {
    %c0_i32 = arith.constant 0 : i32
    %c0_i32_0 = arith.constant 0 : i32
    %c0_i32_1 = arith.constant 0 : i32
    return %c0_i32, %c0_i32_0 : i32, i32
  }
  func.func @transform_2(%arg0: i32) -> (i32, i32) {
    %c0_i32 = arith.constant 0 : i32
    %c0_i32_0 = arith.constant 0 : i32
    %c0_i32_1 = arith.constant 0 : i32
    return %c0_i32, %c0_i32_0 : i32, i32
  }
  func.func @transform_3(%arg0: i32) -> (i32, i32) {
    %c0_i32 = arith.constant 0 : i32
    %c0_i32_0 = arith.constant 0 : i32
    %c0_i32_1 = arith.constant 0 : i32
    return %c0_i32, %c0_i32_0 : i32, i32
  }
  func.func @transform_4(%arg0: i32) -> (i32, i32) {
    %c0_i32 = arith.constant 0 : i32
    %c0_i32_0 = arith.constant 0 : i32
    %c0_i32_1 = arith.constant 0 : i32
    return %c0_i32, %c0_i32_0 : i32, i32
  }
  func.func @transform_5(%arg0: i32) -> (i32, i32) {
    %c0_i32 = arith.constant 0 : i32
    %c0_i32_0 = arith.constant 0 : i32
    %c0_i32_1 = arith.constant 0 : i32
    return %c0_i32, %c0_i32_0 : i32, i32
  }
  func.func @transform_6(%arg0: i32) -> (i32, i32) {
    %c0_i32 = arith.constant 0 : i32
    %c0_i32_0 = arith.constant 0 : i32
    %c0_i32_1 = arith.constant 0 : i32
    return %c0_i32, %c0_i32_0 : i32, i32
  }
  func.func @transform_7(%arg0: i32) -> (i32, i32) {
    %c0_i32 = arith.constant 0 : i32
    %c0_i32_0 = arith.constant 0 : i32
    %c0_i32_1 = arith.constant 0 : i32
    return %c0_i32, %c0_i32_0 : i32, i32
  }
  func.func @transform_8(%arg0: i32) -> (i32, i32) {
    %c0_i32 = arith.constant 0 : i32
    %c0_i32_0 = arith.constant 0 : i32
    %c0_i32_1 = arith.constant 0 : i32
    return %c0_i32, %c0_i32_0 : i32, i32
  }
  func.func @transform_9(%arg0: i32) -> (i32, i32) {
    %c0_i32 = arith.constant 0 : i32
    %c0_i32_0 = arith.constant 0 : i32
    %c0_i32_1 = arith.constant 0 : i32
    return %c0_i32, %c0_i32_0 : i32, i32
  }
  func.func @transform_10(%arg0: i32) -> (i32, i32) {
    %c0_i32 = arith.constant 0 : i32
    %c0_i32_0 = arith.constant 0 : i32
    %c0_i32_1 = arith.constant 0 : i32
    return %c0_i32, %c0_i32_0 : i32, i32
  }
  func.func @transform_11(%arg0: i32) -> (i32, i32) {
    %c0_i32 = arith.constant 0 : i32
    %c0_i32_0 = arith.constant 0 : i32
    %c0_i32_1 = arith.constant 0 : i32
    return %c0_i32, %c0_i32_0 : i32, i32
  }
  func.func @transform_12(%arg0: i32) -> (i32, i32) {
    %c0_i32 = arith.constant 0 : i32
    %c0_i32_0 = arith.constant 0 : i32
    %c0_i32_1 = arith.constant 0 : i32
    return %c0_i32, %c0_i32_0 : i32, i32
  }
  func.func @transform_13(%arg0: i32) -> (i32, i32) {
    %c0_i32 = arith.constant 0 : i32
    %c0_i32_0 = arith.constant 0 : i32
    %c0_i32_1 = arith.constant 0 : i32
    return %c0_i32, %c0_i32_0 : i32, i32
  }
  func.func @transform_14(%arg0: i32) -> (i32, i32) {
    %c0_i32 = arith.constant 0 : i32
    %c0_i32_0 = arith.constant 0 : i32
    return %c0_i32, %arg0 : i32, i32
  }
}

</mosaic_0001>

<llo_original>
// kernel: tpu_custom_call.1
$region0: #{tpu_custom_call.1}
  #allocation0 [shape = 'u32[]', space=smem, size = 0x4, offset = 0x4, fixed_abs, tag = 'smem constant byte address 0x4 - core index']
  #allocation1 [shape = 'u32[144,128]{1,0:T(1,128)}', space=vmem, size = 0x12000, scoped, tag = 'internal scratch']
  %s0 = inlined_call_operand.vmem [shape: f32[1,16,8], index: 0, kind: input, shape index: {}]
  %s1 = inlined_call_operand.vmem [shape: bf16[16,16], index: 1, kind: input, shape index: {}]
  %s2 = inlined_call_operand.vmem [shape: bf16[8,16], index: 2, kind: input, shape index: {}]
  %s3 = inlined_call_operand.vmem [shape: bf16[8,16], index: 3, kind: input, shape index: {}]
  %s4 = inlined_call_operand.vmem [shape: f32[1,16], index: 4, kind: input, shape index: {}]
  %s5 = inlined_call_operand.vmem [shape: bf16[16,2], index: 5, kind: input, shape index: {}]
  %s6 = inlined_call_operand.vmem [shape: bf16[16,16], index: 6, kind: input, shape index: {}]
  %s7 = inlined_call_operand.vmem [shape: bf16[16,16], index: 7, kind: input, shape index: {}]
  %s8 = inlined_call_operand.vmem [shape: f32[1,16], index: 8, kind: input, shape index: {}]
  %s9 = inlined_call_operand.vmem [shape: bf16[16,2], index: 9, kind: input, shape index: {}]
  %s10 = inlined_call_operand.vmem [shape: bf16[32,16], index: 10, kind: input, shape index: {}]
  %s11 = inlined_call_operand.vmem [shape: f32[32,1], index: 11, kind: input, shape index: {}]
  %s12 = inlined_call_operand.vmem [shape: bf16[3,32], index: 12, kind: input, shape index: {}]
  %s13 = inlined_call_operand.vmem [shape: f32[3,1], index: 13, kind: input, shape index: {}]
  %s14 = inlined_call_operand.vmem [shape: f32[3,2], index: 14, kind: output, shape index: {}]
  %s15 = sld [smem:[#allocation0]]
  $region66: #{tpu_custom_call.1} parent=0
    _
  %s17 = ssub.s32 1, %s15
  %s18 = scalar_select 0, %s17, %s15
  // Predicated region
  $region2: #{tpu_custom_call.1} parent=0 // pred_check
    _
  $region3: #{tpu_custom_call.1} parent=0 // pred_check_branch
    %20 = sbr.rel (0) target = $region5
  $region4: #{tpu_custom_call.1} parent=0 // pred_region
    _
  $region5: #{tpu_custom_call.1} parent=0 // pred_fallthru
    _
  // Predicated region
  $region6: #{tpu_custom_call.1} parent=0 // pred_check
    _
  $region7: #{tpu_custom_call.1} parent=0 // pred_check_branch
    %22 = sbr.rel (0) target = $region9
  $region8: #{tpu_custom_call.1} parent=0 // pred_region
    _
  $region9: #{tpu_custom_call.1} parent=0 // pred_fallthru
    _
  // Predicated region
  $region10: #{tpu_custom_call.1} parent=0 // pred_check
    _
  $region11: #{tpu_custom_call.1} parent=0 // pred_check_branch
    %24 = sbr.rel (0) target = $region13
  $region12: #{tpu_custom_call.1} parent=0 // pred_region
    _
  $region13: #{tpu_custom_call.1} parent=0 // pred_fallthru
    _
  // Predicated region
  $region14: #{tpu_custom_call.1} parent=0 // pred_check
    _
  $region15: #{tpu_custom_call.1} parent=0 // pred_check_branch
    %26 = sbr.rel (0) target = $region17
  $region16: #{tpu_custom_call.1} parent=0 // pred_region
    _
  $region17: #{tpu_custom_call.1} parent=0 // pred_fallthru
    _
  // Predicated region
  $region18: #{tpu_custom_call.1} parent=0 // pred_check
    _
  $region19: #{tpu_custom_call.1} parent=0 // pred_check_branch
    %28 = sbr.rel (0) target = $region21
  $region20: #{tpu_custom_call.1} parent=0 // pred_region
    _
  $region21: #{tpu_custom_call.1} parent=0 // pred_fallthru
    _
  // Predicated region
  $region22: #{tpu_custom_call.1} parent=0 // pred_check
    _
  $region23: #{tpu_custom_call.1} parent=0 // pred_check_branch
    %30 = sbr.rel (0) target = $region25
  $region24: #{tpu_custom_call.1} parent=0 // pred_region
    _
  $region25: #{tpu_custom_call.1} parent=0 // pred_fallthru
    _
  // Predicated region
  $region26: #{tpu_custom_call.1} parent=0 // pred_check
    _
  $region27: #{tpu_custom_call.1} parent=0 // pred_check_branch
    %32 = sbr.rel (0) target = $region29
  $region28: #{tpu_custom_call.1} parent=0 // pred_region
    _
  $region29: #{tpu_custom_call.1} parent=0 // pred_fallthru
    _
  // Predicated region
  $region30: #{tpu_custom_call.1} parent=0 // pred_check
    _
  $region31: #{tpu_custom_call.1} parent=0 // pred_check_branch
    %34 = sbr.rel (0) target = $region33
  $region32: #{tpu_custom_call.1} parent=0 // pred_region
    _
  $region33: #{tpu_custom_call.1} parent=0 // pred_fallthru
    _
  // Predicated region
  $region34: #{tpu_custom_call.1} parent=0 // pred_check
    _
  $region35: #{tpu_custom_call.1} parent=0 // pred_check_branch
    %36 = sbr.rel (0) target = $region37
  $region36: #{tpu_custom_call.1} parent=0 // pred_region
    _
  $region37: #{tpu_custom_call.1} parent=0 // pred_fallthru
    _
  // Predicated region
  $region38: #{tpu_custom_call.1} parent=0 // pred_check
    _
  $region39: #{tpu_custom_call.1} parent=0 // pred_check_branch
    %38 = sbr.rel (0) target = $region41
  $region40: #{tpu_custom_call.1} parent=0 // pred_region
    _
  $region41: #{tpu_custom_call.1} parent=0 // pred_fallthru
    _
  // Predicated region
  $region42: #{tpu_custom_call.1} parent=0 // pred_check
    _
  $region43: #{tpu_custom_call.1} parent=0 // pred_check_branch
    %40 = sbr.rel (0) target = $region45
  $region44: #{tpu_custom_call.1} parent=0 // pred_region
    _
  $region45: #{tpu_custom_call.1} parent=0 // pred_fallthru
    _
  // Predicated region
  $region46: #{tpu_custom_call.1} parent=0 // pred_check
    _
  $region47: #{tpu_custom_call.1} parent=0 // pred_check_branch
    %42 = sbr.rel (0) target = $region49
  $region48: #{tpu_custom_call.1} parent=0 // pred_region
    _
  $region49: #{tpu_custom_call.1} parent=0 // pred_fallthru
    _
  // Predicated region
  $region50: #{tpu_custom_call.1} parent=0 // pred_check
    _
  $region51: #{tpu_custom_call.1} parent=0 // pred_check_branch
    %44 = sbr.rel (0) target = $region53
  $region52: #{tpu_custom_call.1} parent=0 // pred_region
    _
  $region53: #{tpu_custom_call.1} parent=0 // pred_fallthru
    _
  // Predicated region
  $region54: #{tpu_custom_call.1} parent=0 // pred_check
    _
  $region55: #{tpu_custom_call.1} parent=0 // pred_check_branch
    %46 = sbr.rel (0) target = $region57
  $region56: #{tpu_custom_call.1} parent=0 // pred_region
    _
  $region57: #{tpu_custom_call.1} parent=0 // pred_fallthru
    _
  %v48 = vld [vmem:[%s1] sm:$0xf]
  %v49 = vld [vmem:[%s1 + $0x4] sm:$0xf]
  %v50 = vld [vmem:[%s0] sm:$0xff]
  %v51 = vld [vmem:[%s0 + $0x8] sm:$0xff]
  %v52 = vpack.c.bf16 %v51, %v50
  %v53 = vld [vmem:[%s2] sm:$0xf]
  %v56 = vunpack.c.l.b16 %v48
  %v57 = vunpack.c.l.b16 %v49
  %v58 = vpack.c.b16 %v57, %v56
  %vm59 = vcmask 130048
  %v61 = vsel %vm59, %v58, 0
  %63 = vmatprep.subr.bf16.mxu0 0
  %64 = vmatpush1.bf16.msra.mxu0 0
  %65 = vmatprep.subr.bf16.mxu0 0
  %66 = vmatpush1.bf16.msra.mxu0 0
  %67 = vmatprep.subr.bf16.mxu0 0
  %68 = vmatpush1.bf16.msra.mxu0 0
  %69 = vmatprep.subr.bf16.mxu0 0
  %70 = vmatpush1.bf16.msra.mxu0 0
  %71 = vmatprep.subr.bf16.mxu0 0
  %72 = vmatpush1.bf16.msra.mxu0 0
  %73 = vmatprep.subr.bf16.mxu0 0
  %74 = vmatpush1.bf16.msra.mxu0 0
  %75 = vmatprep.subr.bf16.mxu0 0
  %76 = vmatpush1.bf16.msra.mxu0 0
  %77 = vmatprep.subr.bf16.mxu0 0
  %78 = vmatpush1.bf16.msra.mxu0 %v52
  %79 = vmatprep.subr.bf16.mxu0 0
  %80 = vmatpush2.bf16.msra.mxu0 0
  %81 = vmatprep.subr.bf16.mxu0 0
  %82 = vmatpush2.bf16.msra.mxu0 0
  %83 = vmatprep.subr.bf16.mxu0 0
  %84 = vmatpush2.bf16.msra.mxu0 0
  %85 = vmatprep.subr.bf16.mxu0 0
  %86 = vmatpush2.bf16.msra.mxu0 0
  %87 = vmatprep.subr.bf16.mxu0 0
  %88 = vmatpush2.bf16.msra.mxu0 0
  %89 = vmatprep.subr.bf16.mxu0 0
  %90 = vmatpush2.bf16.msra.mxu0 0
  %91 = vmatprep.subr.bf16.mxu0 0
  %92 = vmatpush2.bf16.msra.mxu0 0
  %93 = vmatprep.subr.bf16.mxu0 0
  %94 = vmatpush2.bf16.msra.mxu0 0
  %95 = vmatprep.mubr.bf16.mxu0 0
  %96 = vmatmul.mubr.bf16.gmra.mxu0 %v61
  %v97 = vpop.f32.mrf.mxu0
  %v98 = vadd.f32 0.0, %v97
  %v99 = vpop.f32.mrf.mxu0
  %v100 = vpop.f32.mrf.mxu0
  %v101 = vadd.f32 0.0, %v100
  %v102 = vpop.f32.mrf.mxu0
  %103 = vdwg.mxu0
  %v104 = vpack.c.bf16 %v101, %v98
  %v105 = vld [vmem:[%s3] sm:$0xf]
  %vm106 = vcmask 64512
  %v108 = vsel %vm106, %v104, 0
  %vm110 = vcmask 1043456
  %v112 = vsel %vm110, %v105, 0
  %114 = vmatprep.subr.bf16.mxu0 0
  %115 = vmatpush1.bf16.msra.mxu0 0
  %116 = vmatprep.subr.bf16.mxu0 0
  %117 = vmatpush1.bf16.msra.mxu0 0
  %118 = vmatprep.subr.bf16.mxu0 0
  %119 = vmatpush1.bf16.msra.mxu0 0
  %120 = vmatprep.subr.bf16.mxu0 0
  %121 = vmatpush1.bf16.msra.mxu0 0
  %122 = vmatprep.subr.bf16.mxu0 0
  %123 = vmatpush1.bf16.msra.mxu0 0
  %124 = vmatprep.subr.bf16.mxu0 0
  %125 = vmatpush1.bf16.msra.mxu0 0
  %126 = vmatprep.subr.bf16.mxu0 0
  %127 = vmatpush1.bf16.msra.mxu0 0
  %128 = vmatprep.subr.bf16.mxu0 0
  %129 = vmatpush1.bf16.msra.mxu0 %v112
  %130 = vmatprep.subr.bf16.mxu0 0
  %131 = vmatpush2.bf16.msra.mxu0 0
  %132 = vmatprep.subr.bf16.mxu0 0
  %133 = vmatpush2.bf16.msra.mxu0 0
  %134 = vmatprep.subr.bf16.mxu0 0
  %135 = vmatpush2.bf16.msra.mxu0 0
  %136 = vmatprep.subr.bf16.mxu0 0
  %137 = vmatpush2.bf16.msra.mxu0 0
  %138 = vmatprep.subr.bf16.mxu0 0
  %139 = vmatpush2.bf16.msra.mxu0 0
  %140 = vmatprep.subr.bf16.mxu0 0
  %141 = vmatpush2.bf16.msra.mxu0 0
  %142 = vmatprep.subr.bf16.mxu0 0
  %143 = vmatpush2.bf16.msra.mxu0 0
  %144 = vmatprep.subr.bf16.mxu0 0
  %145 = vmatpush2.bf16.msra.mxu0 0
  %146 = vmatprep.mubr.bf16.mxu0 0
  %147 = vmatmul.mubr.bf16.gmra.mxu0 %v108
  %v148 = vpop.f32.mrf.mxu0
  %v149 = vadd.f32 0.0, %v148
  %v150 = vpop.f32.mrf.mxu0
  %v151 = vpop.f32.mrf.mxu0
  %v152 = vadd.f32 0.0, %v151
  %v153 = vpop.f32.mrf.mxu0
  %154 = vdwg.mxu0
  %v156 = vsel %vm106, %v52, 0
  %v159 = vsel %vm110, %v53, 0
  %161 = vmatprep.subr.bf16.mxu0 0
  %162 = vmatpush1.bf16.msra.mxu0 0
  %163 = vmatprep.subr.bf16.mxu0 0
  %164 = vmatpush1.bf16.msra.mxu0 0
  %165 = vmatprep.subr.bf16.mxu0 0
  %166 = vmatpush1.bf16.msra.mxu0 0
  %167 = vmatprep.subr.bf16.mxu0 0
  %168 = vmatpush1.bf16.msra.mxu0 0
  %169 = vmatprep.subr.bf16.mxu0 0
  %170 = vmatpush1.bf16.msra.mxu0 0
  %171 = vmatprep.subr.bf16.mxu0 0
  %172 = vmatpush1.bf16.msra.mxu0 0
  %173 = vmatprep.subr.bf16.mxu0 0
  %174 = vmatpush1.bf16.msra.mxu0 0
  %175 = vmatprep.subr.bf16.mxu0 0
  %176 = vmatpush1.bf16.msra.mxu0 %v159
  %177 = vmatprep.subr.bf16.mxu0 0
  %178 = vmatpush2.bf16.msra.mxu0 0
  %179 = vmatprep.subr.bf16.mxu0 0
  %180 = vmatpush2.bf16.msra.mxu0 0
  %181 = vmatprep.subr.bf16.mxu0 0
  %182 = vmatpush2.bf16.msra.mxu0 0
  %183 = vmatprep.subr.bf16.mxu0 0
  %184 = vmatpush2.bf16.msra.mxu0 0
  %185 = vmatprep.subr.bf16.mxu0 0
  %186 = vmatpush2.bf16.msra.mxu0 0
  %187 = vmatprep.subr.bf16.mxu0 0
  %188 = vmatpush2.bf16.msra.mxu0 0
  %189 = vmatprep.subr.bf16.mxu0 0
  %190 = vmatpush2.bf16.msra.mxu0 0
  %191 = vmatprep.subr.bf16.mxu0 0
  %192 = vmatpush2.bf16.msra.mxu0 0
  %193 = vmatprep.mubr.bf16.mxu0 0
  %194 = vmatmul.mubr.bf16.gmra.mxu0 %v156
  %v195 = vpop.f32.mrf.mxu0
  %v196 = vadd.f32 %v149, %v195
  %v197 = vpop.f32.mrf.mxu0
  %v198 = vpop.f32.mrf.mxu0
  %v199 = vadd.f32 %v152, %v198
  %v200 = vpop.f32.mrf.mxu0
  %201 = vdwg.mxu0
  %v202 = vld [vmem:[%s4] sm:$0x1]
  %v204 = vlaneseq
  %v205 = vshrl.u32 %v204, 7
  %v206 = vsub.s32 0, %v205
  %v207 = vrot.slane %v202, %v206
  %v209 = vadd.f32 %v196, %v207
  %v210 = vadd.f32 %v199, %v207
  %v211 = vmax.f32 %v209, 0.0
  %v212 = vmax.f32 %v210, 0.0
  %v213 = vpack.c.bf16 %v212, %v211
  %v214 = vld [vmem:[%s5] sm:$0xf]
  %v215 = vld [vmem:[%s5 + $0x4] sm:$0xf]
  %v216 = vld [vmem:[%s6] sm:$0xf]
  %v217 = vld [vmem:[%s6 + $0x4] sm:$0xf]
  %218 = vmatprep.subr.bf16.mxu0 0
  %219 = vmatpush1.bf16.msra.mxu0 0
  %220 = vmatprep.subr.bf16.mxu0 0
  %221 = vmatpush1.bf16.msra.mxu0 0
  %222 = vmatprep.subr.bf16.mxu0 0
  %223 = vmatpush1.bf16.msra.mxu0 0
  %224 = vmatprep.subr.bf16.mxu0 0
  %225 = vmatpush1.bf16.msra.mxu0 0
  %226 = vmatprep.subr.bf16.mxu0 0
  %227 = vmatpush1.bf16.msra.mxu0 0
  %228 = vmatprep.subr.bf16.mxu0 0
  %229 = vmatpush1.bf16.msra.mxu0 0
  %230 = vmatprep.subr.bf16.mxu0 0
  %231 = vmatpush1.bf16.msra.mxu0 0
  %232 = vmatprep.subr.bf16.mxu0 0
  %233 = vmatpush1.bf16.msra.mxu0 %v213
  %234 = vmatprep.subr.bf16.mxu0 0
  %235 = vmatpush2.bf16.msra.mxu0 0
  %236 = vmatprep.subr.bf16.mxu0 0
  %237 = vmatpush2.bf16.msra.mxu0 0
  %238 = vmatprep.subr.bf16.mxu0 0
  %239 = vmatpush2.bf16.msra.mxu0 0
  %240 = vmatprep.subr.bf16.mxu0 0
  %241 = vmatpush2.bf16.msra.mxu0 0
  %242 = vmatprep.subr.bf16.mxu0 0
  %243 = vmatpush2.bf16.msra.mxu0 0
  %244 = vmatprep.subr.bf16.mxu0 0
  %245 = vmatpush2.bf16.msra.mxu0 0
  %246 = vmatprep.subr.bf16.mxu0 0
  %247 = vmatpush2.bf16.msra.mxu0 0
  %248 = vmatprep.subr.bf16.mxu0 0
  %249 = vmatpush2.bf16.msra.mxu0 0
  %250 = vmatprep.mubr.bf16.mxu0 0
  %251 = vmatmul.mubr.bf16.gmra.mxu0 %v61
  %v252 = vpop.f32.mrf.mxu0
  %v253 = vadd.f32 0.0, %v252
  %v254 = vpop.f32.mrf.mxu0
  %v255 = vpop.f32.mrf.mxu0
  %v256 = vadd.f32 0.0, %v255
  %v257 = vpop.f32.mrf.mxu0
  %258 = vdwg.mxu0
  %v259 = vpack.c.bf16 %v256, %v253
  %v260 = vld [vmem:[%s7] sm:$0xf]
  %v261 = vld [vmem:[%s7 + $0x4] sm:$0xf]
  %v264 = vunpack.c.l.b16 %v260
  %v265 = vunpack.c.l.b16 %v261
  %v266 = vpack.c.b16 %v265, %v264
  %v269 = vsel %vm59, %v259, 0
  %271 = vmatprep.subr.bf16.mxu0 0
  %272 = vmatpush1.bf16.msra.mxu0 0
  %273 = vmatprep.subr.bf16.mxu0 0
  %274 = vmatpush1.bf16.msra.mxu0 0
  %275 = vmatprep.subr.bf16.mxu0 0
  %276 = vmatpush1.bf16.msra.mxu0 0
  %277 = vmatprep.subr.bf16.mxu0 0
  %278 = vmatpush1.bf16.msra.mxu0 0
  %279 = vmatprep.subr.bf16.mxu0 0
  %280 = vmatpush1.bf16.msra.mxu0 0
  %281 = vmatprep.subr.bf16.mxu0 0
  %282 = vmatpush1.bf16.msra.mxu0 0
  %283 = vmatprep.subr.bf16.mxu0 0
  %284 = vmatpush1.bf16.msra.mxu0 0
  %285 = vmatprep.subr.bf16.mxu0 0
  %286 = vmatpush1.bf16.msra.mxu0 %v266
  %287 = vmatprep.subr.bf16.mxu0 0
  %288 = vmatpush2.bf16.msra.mxu0 0
  %289 = vmatprep.subr.bf16.mxu0 0
  %290 = vmatpush2.bf16.msra.mxu0 0
  %291 = vmatprep.subr.bf16.mxu0 0
  %292 = vmatpush2.bf16.msra.mxu0 0
  %293 = vmatprep.subr.bf16.mxu0 0
  %294 = vmatpush2.bf16.msra.mxu0 0
  %295 = vmatprep.subr.bf16.mxu0 0
  %296 = vmatpush2.bf16.msra.mxu0 0
  %297 = vmatprep.subr.bf16.mxu0 0
  %298 = vmatpush2.bf16.msra.mxu0 0
  %299 = vmatprep.subr.bf16.mxu0 0
  %300 = vmatpush2.bf16.msra.mxu0 0
  %301 = vmatprep.subr.bf16.mxu0 0
  %302 = vmatpush2.bf16.msra.mxu0 0
  %303 = vmatprep.mubr.bf16.mxu0 0
  %304 = vmatmul.mubr.bf16.gmra.mxu0 %v269
  %v305 = vpop.f32.mrf.mxu0
  %v306 = vadd.f32 0.0, %v305
  %v307 = vpop.f32.mrf.mxu0
  %v308 = vpop.f32.mrf.mxu0
  %v309 = vadd.f32 0.0, %v308
  %v310 = vpop.f32.mrf.mxu0
  %311 = vdwg.mxu0
  %v314 = vunpack.c.l.b16 %v216
  %v315 = vunpack.c.l.b16 %v217
  %v316 = vpack.c.b16 %v315, %v314
  %v319 = vsel %vm59, %v213, 0
  %321 = vmatprep.subr.bf16.mxu0 0
  %322 = vmatpush1.bf16.msra.mxu0 0
  %323 = vmatprep.subr.bf16.mxu0 0
  %324 = vmatpush1.bf16.msra.mxu0 0
  %325 = vmatprep.subr.bf16.mxu0 0
  %326 = vmatpush1.bf16.msra.mxu0 0
  %327 = vmatprep.subr.bf16.mxu0 0
  %328 = vmatpush1.bf16.msra.mxu0 0
  %329 = vmatprep.subr.bf16.mxu0 0
  %330 = vmatpush1.bf16.msra.mxu0 0
  %331 = vmatprep.subr.bf16.mxu0 0
  %332 = vmatpush1.bf16.msra.mxu0 0
  %333 = vmatprep.subr.bf16.mxu0 0
  %334 = vmatpush1.bf16.msra.mxu0 0
  %335 = vmatprep.subr.bf16.mxu0 0
  %336 = vmatpush1.bf16.msra.mxu0 %v316
  %337 = vmatprep.subr.bf16.mxu0 0
  %338 = vmatpush2.bf16.msra.mxu0 0
  %339 = vmatprep.subr.bf16.mxu0 0
  %340 = vmatpush2.bf16.msra.mxu0 0
  %341 = vmatprep.subr.bf16.mxu0 0
  %342 = vmatpush2.bf16.msra.mxu0 0
  %343 = vmatprep.subr.bf16.mxu0 0
  %344 = vmatpush2.bf16.msra.mxu0 0
  %345 = vmatprep.subr.bf16.mxu0 0
  %346 = vmatpush2.bf16.msra.mxu0 0
  %347 = vmatprep.subr.bf16.mxu0 0
  %348 = vmatpush2.bf16.msra.mxu0 0
  %349 = vmatprep.subr.bf16.mxu0 0
  %350 = vmatpush2.bf16.msra.mxu0 0
  %351 = vmatprep.subr.bf16.mxu0 0
  %352 = vmatpush2.bf16.msra.mxu0 0
  %353 = vmatprep.mubr.bf16.mxu0 0
  %354 = vmatmul.mubr.bf16.gmra.mxu0 %v319
  %v355 = vpop.f32.mrf.mxu0
  %v356 = vadd.f32 %v306, %v355
  %v357 = vpop.f32.mrf.mxu0
  %v358 = vpop.f32.mrf.mxu0
  %v359 = vadd.f32 %v309, %v358
  %v360 = vpop.f32.mrf.mxu0
  %361 = vdwg.mxu0
  %v362 = vld [vmem:[%s8] sm:$0x1]
  %v364 = vlaneseq
  %v365 = vshrl.u32 %v364, 7
  %v366 = vsub.s32 0, %v365
  %v367 = vrot.slane %v362, %v366
  %v369 = vadd.f32 %v356, %v367
  %v370 = vadd.f32 %v359, %v367
  %v371 = vmax.f32 %v369, 0.0
  %v372 = vmax.f32 %v370, 0.0
  %v373 = vpack.c.bf16 %v372, %v371
  %v374 = vld [vmem:[%s9] sm:$0xf]
  %v375 = vld [vmem:[%s9 + $0x4] sm:$0xf]
  %v378 = vunpack.c.l.b16 %v374
  %v379 = vunpack.c.l.b16 %v375
  %v380 = vpack.c.b16 %v379, %v378
  %v383 = vsel %vm59, %v373, 0
  %385 = vmatprep.subr.bf16.mxu0 0
  %386 = vmatpush1.bf16.msra.mxu0 0
  %387 = vmatprep.subr.bf16.mxu0 0
  %388 = vmatpush1.bf16.msra.mxu0 0
  %389 = vmatprep.subr.bf16.mxu0 0
  %390 = vmatpush1.bf16.msra.mxu0 0
  %391 = vmatprep.subr.bf16.mxu0 0
  %392 = vmatpush1.bf16.msra.mxu0 0
  %393 = vmatprep.subr.bf16.mxu0 0
  %394 = vmatpush1.bf16.msra.mxu0 0
  %395 = vmatprep.subr.bf16.mxu0 0
  %396 = vmatpush1.bf16.msra.mxu0 0
  %397 = vmatprep.subr.bf16.mxu0 0
  %398 = vmatpush1.bf16.msra.mxu0 0
  %399 = vmatprep.subr.bf16.mxu0 0
  %400 = vmatpush1.bf16.msra.mxu0 %v380
  %401 = vmatprep.subr.bf16.mxu0 0
  %402 = vmatpush2.bf16.msra.mxu0 0
  %403 = vmatprep.subr.bf16.mxu0 0
  %404 = vmatpush2.bf16.msra.mxu0 0
  %405 = vmatprep.subr.bf16.mxu0 0
  %406 = vmatpush2.bf16.msra.mxu0 0
  %407 = vmatprep.subr.bf16.mxu0 0
  %408 = vmatpush2.bf16.msra.mxu0 0
  %409 = vmatprep.subr.bf16.mxu0 0
  %410 = vmatpush2.bf16.msra.mxu0 0
  %411 = vmatprep.subr.bf16.mxu0 0
  %412 = vmatpush2.bf16.msra.mxu0 0
  %413 = vmatprep.subr.bf16.mxu0 0
  %414 = vmatpush2.bf16.msra.mxu0 0
  %415 = vmatprep.subr.bf16.mxu0 0
  %416 = vmatpush2.bf16.msra.mxu0 0
  %417 = vmatprep.mubr.bf16.mxu0 0
  %418 = vmatmul.mubr.bf16.gmra.mxu0 %v383
  %v419 = vpop.f32.mrf.mxu0
  %v420 = vadd.f32 0.0, %v419
  %v421 = vpop.f32.mrf.mxu0
  %v422 = vpop.f32.mrf.mxu0
  %v423 = vadd.f32 0.0, %v422
  %v424 = vpop.f32.mrf.mxu0
  %425 = vdwg.mxu0
  %v428 = vunpack.c.l.b16 %v214
  %v429 = vunpack.c.l.b16 %v215
  %v430 = vpack.c.b16 %v429, %v428
  %432 = vmatprep.subr.bf16.mxu0 0
  %433 = vmatpush1.bf16.msra.mxu0 0
  %434 = vmatprep.subr.bf16.mxu0 0
  %435 = vmatpush1.bf16.msra.mxu0 0
  %436 = vmatprep.subr.bf16.mxu0 0
  %437 = vmatpush1.bf16.msra.mxu0 0
  %438 = vmatprep.subr.bf16.mxu0 0
  %439 = vmatpush1.bf16.msra.mxu0 0
  %440 = vmatprep.subr.bf16.mxu0 0
  %441 = vmatpush1.bf16.msra.mxu0 0
  %442 = vmatprep.subr.bf16.mxu0 0
  %443 = vmatpush1.bf16.msra.mxu0 0
  %444 = vmatprep.subr.bf16.mxu0 0
  %445 = vmatpush1.bf16.msra.mxu0 0
  %446 = vmatprep.subr.bf16.mxu0 0
  %447 = vmatpush1.bf16.msra.mxu0 %v430
  %448 = vmatprep.subr.bf16.mxu0 0
  %449 = vmatpush2.bf16.msra.mxu0 0
  %450 = vmatprep.subr.bf16.mxu0 0
  %451 = vmatpush2.bf16.msra.mxu0 0
  %452 = vmatprep.subr.bf16.mxu0 0
  %453 = vmatpush2.bf16.msra.mxu0 0
  %454 = vmatprep.subr.bf16.mxu0 0
  %455 = vmatpush2.bf16.msra.mxu0 0
  %456 = vmatprep.subr.bf16.mxu0 0
  %457 = vmatpush2.bf16.msra.mxu0 0
  %458 = vmatprep.subr.bf16.mxu0 0
  %459 = vmatpush2.bf16.msra.mxu0 0
  %460 = vmatprep.subr.bf16.mxu0 0
  %461 = vmatpush2.bf16.msra.mxu0 0
  %462 = vmatprep.subr.bf16.mxu0 0
  %463 = vmatpush2.bf16.msra.mxu0 0
  %464 = vmatprep.mubr.bf16.mxu0 0
  %465 = vmatmul.mubr.bf16.gmra.mxu0 %v319
  %v466 = vpop.f32.mrf.mxu0
  %v467 = vadd.f32 %v420, %v466
  %v468 = vpop.f32.mrf.mxu0
  %v469 = vpop.f32.mrf.mxu0
  %v470 = vadd.f32 %v423, %v469
  %v471 = vpop.f32.mrf.mxu0
  %472 = vdwg.mxu0
  %v473 = vld [vmem:[%s10] sm:$0xf]
  %v474 = vld [vmem:[%s10 + $0x4] sm:$0xf]
  %v475 = vld [vmem:[%s10 + $0x8] sm:$0xf]
  %v476 = vld [vmem:[%s10 + $0xc] sm:$0xf]
  %v477 = vld [vmem:[%s11] sm:$0xff]
  %v478 = vld [vmem:[%s11 + $0x8] sm:$0xff]
  %v479 = vld [vmem:[%s11 + $0x10] sm:$0xff]
  %v480 = vld [vmem:[%s11 + $0x18] sm:$0xff]
  %v481 = vld [vmem:[%s12] sm:$0x3]
  %v482 = vld [vmem:[%s13] sm:$0x7]
  %v483 = vpack.c.bf16 %v470, %v467
  %485 = vset.pattern.permute.xlu0 0
  %486 = vperm.xlu0 %485, %v477
  %v487 = vpop.permute.xlu0 %486
  %490 = vset.pattern.permute.xlu0 0
  %491 = vperm.xlu0 %490, %v478
  %v492 = vpop.permute.xlu0 %491
  %495 = vset.pattern.permute.xlu0 0
  %496 = vperm.xlu0 %495, %v479
  %v497 = vpop.permute.xlu0 %496
  %500 = vset.pattern.permute.xlu0 0
  %501 = vperm.xlu0 %500, %v480
  %v502 = vpop.permute.xlu0 %501
  %v508 = vunpack.c.l.b16 %v473
  %v509 = vunpack.c.l.b16 %v474
  %v510 = vunpack.c.l.b16 %v475
  %v511 = vunpack.c.l.b16 %v476
  %v512 = vpack.c.b16 %v509, %v508
  %v513 = vpack.c.b16 %v511, %v510
  %v515 = vsel %vm59, %v512, 0
  %v518 = vsel %vm59, %v513, 0
  %520 = vmatprep.subr.bf16.mxu0 0
  %521 = vmatpush1.bf16.msra.mxu0 0
  %522 = vmatprep.subr.bf16.mxu0 0
  %523 = vmatpush1.bf16.msra.mxu0 0
  %524 = vmatprep.subr.bf16.mxu0 0
  %525 = vmatpush1.bf16.msra.mxu0 0
  %526 = vmatprep.subr.bf16.mxu0 0
  %527 = vmatpush1.bf16.msra.mxu0 0
  %528 = vmatprep.subr.bf16.mxu0 0
  %529 = vmatpush1.bf16.msra.mxu0 0
  %530 = vmatprep.subr.bf16.mxu0 0
  %531 = vmatpush1.bf16.msra.mxu0 0
  %532 = vmatprep.subr.bf16.mxu0 0
  %533 = vmatpush1.bf16.msra.mxu0 0
  %534 = vmatprep.subr.bf16.mxu0 0
  %535 = vmatpush1.bf16.msra.mxu0 %v483
  %536 = vmatprep.subr.bf16.mxu0 0
  %537 = vmatpush2.bf16.msra.mxu0 0
  %538 = vmatprep.subr.bf16.mxu0 0
  %539 = vmatpush2.bf16.msra.mxu0 0
  %540 = vmatprep.subr.bf16.mxu0 0
  %541 = vmatpush2.bf16.msra.mxu0 0
  %542 = vmatprep.subr.bf16.mxu0 0
  %543 = vmatpush2.bf16.msra.mxu0 0
  %544 = vmatprep.subr.bf16.mxu0 0
  %545 = vmatpush2.bf16.msra.mxu0 0
  %546 = vmatprep.subr.bf16.mxu0 0
  %547 = vmatpush2.bf16.msra.mxu0 0
  %548 = vmatprep.subr.bf16.mxu0 0
  %549 = vmatpush2.bf16.msra.mxu0 0
  %550 = vmatprep.subr.bf16.mxu0 0
  %551 = vmatpush2.bf16.msra.mxu0 0
  %552 = vmatprep.mubr.bf16.mxu0 0
  %553 = vmatmul.mubr.bf16.gmra.mxu0 %v515
  %v554 = vpop.f32.mrf.mxu0
  %v555 = vadd.f32 %v487, %v554
  %v556 = vpop.f32.mrf.mxu0
  %v557 = vpop.f32.mrf.mxu0
  %v558 = vadd.f32 %v492, %v557
  %v559 = vpop.f32.mrf.mxu0
  %560 = vmatprep.mubr.bf16.mxu0 0
  %561 = vmatmul.mubr.bf16.gmra.mxu0 %v518
  %v562 = vpop.f32.mrf.mxu0
  %v563 = vadd.f32 %v497, %v562
  %v564 = vpop.f32.mrf.mxu0
  %v565 = vpop.f32.mrf.mxu0
  %v566 = vadd.f32 %v502, %v565
  %v567 = vpop.f32.mrf.mxu0
  %568 = vdwg.mxu0
  %v569 = vmax.f32 %v555, 0.0
  %v570 = vmax.f32 %v558, 0.0
  %v571 = vmax.f32 %v563, 0.0
  %v572 = vmax.f32 %v566, 0.0
  %v573 = vpack.c.bf16 %v570, %v569
  %v574 = vpack.c.bf16 %v572, %v571
  %576 = vset.pattern.permute.xlu0 0
  %577 = vperm.xlu0 %576, %v482
  %v578 = vpop.permute.xlu0 %577
  %vm580 = vcmask 261120
  %v582 = vsel %vm580, %v481, 0
  %584 = vmatprep.subr.bf16.mxu0 0
  %585 = vmatpush1.bf16.msra.mxu0 0
  %586 = vmatprep.subr.bf16.mxu0 0
  %587 = vmatpush1.bf16.msra.mxu0 0
  %588 = vmatprep.subr.bf16.mxu0 0
  %589 = vmatpush1.bf16.msra.mxu0 0
  %590 = vmatprep.subr.bf16.mxu0 0
  %591 = vmatpush1.bf16.msra.mxu0 0
  %592 = vmatprep.subr.bf16.mxu0 0
  %593 = vmatpush1.bf16.msra.mxu0 0
  %594 = vmatprep.subr.bf16.mxu0 0
  %595 = vmatpush1.bf16.msra.mxu0 0
  %596 = vmatprep.subr.bf16.mxu0 0
  %597 = vmatpush1.bf16.msra.mxu0 %v574
  %598 = vmatprep.subr.bf16.mxu0 0
  %599 = vmatpush1.bf16.msra.mxu0 %v573
  %600 = vmatprep.subr.bf16.mxu0 0
  %601 = vmatpush2.bf16.msra.mxu0 0
  %602 = vmatprep.subr.bf16.mxu0 0
  %603 = vmatpush2.bf16.msra.mxu0 0
  %604 = vmatprep.subr.bf16.mxu0 0
  %605 = vmatpush2.bf16.msra.mxu0 0
  %606 = vmatprep.subr.bf16.mxu0 0
  %607 = vmatpush2.bf16.msra.mxu0 0
  %608 = vmatprep.subr.bf16.mxu0 0
  %609 = vmatpush2.bf16.msra.mxu0 0
  %610 = vmatprep.subr.bf16.mxu0 0
  %611 = vmatpush2.bf16.msra.mxu0 0
  %612 = vmatprep.subr.bf16.mxu0 0
  %613 = vmatpush2.bf16.msra.mxu0 0
  %614 = vmatprep.subr.bf16.mxu0 0
  %615 = vmatpush2.bf16.msra.mxu0 0
  %616 = vmatprep.mubr.bf16.mxu0 0
  %617 = vmatmul.mubr.bf16.gmra.mxu0 %v582
  %v618 = vpop.f32.mrf.mxu0
  %v619 = vadd.f32 %v578, %v618
  %v620 = vpop.f32.mrf.mxu0
  %v621 = vpop.f32.mrf.mxu0
  %v622 = vpop.f32.mrf.mxu0
  %623 = vdwg.mxu0
  %vm624 = vcmask 10240
  %v625 = vsel %vm624, %v619, -inf
  %v626 = vrot.slane %v625, 4
  %v627 = vmax.f32 %v625, %v626
  %v628 = vrot.slane %v627, 2
  %v629 = vmax.f32 %v627, %v628
  %v630 = vrot.slane %v629, 1
  %v631 = vmax.f32 %v629, %v630
  %v632 = vsub.f32 %v619, %v631
  %v633 = vmul.f32 %v632, 1.442695
  %v634 = vpow.pop %v633
  %v635 = vsel %vm624, %v634, 0.0
  %v636 = vrot.slane %v635, 4
  %v637 = vadd.f32 %v635, %v636
  %v638 = vrot.slane %v637, 2
  %v639 = vadd.f32 %v637, %v638
  %v640 = vrot.slane %v639, 1
  %v641 = vadd.f32 %v639, %v640
  %v642 = vlog2.pop %v641
  %v643 = vmul.f32 %v642, 0.6931472
  %v644 = vsub.f32 %v632, %v643
  %645 = vst.msk [vmem:[%s14] sm:$0x7] %vm624, %v644
  // Predicated region
  $region58: #{tpu_custom_call.1} parent=0 // pred_check
    _
  $region59: #{tpu_custom_call.1} parent=0 // pred_check_branch
    %647 = sbr.rel (0) target = $region61
  $region60: #{tpu_custom_call.1} parent=0 // pred_region
    _
  $region61: #{tpu_custom_call.1} parent=0 // pred_fallthru
    _
  // Predicated region
  $region62: #{tpu_custom_call.1} parent=0 // pred_check
    _
  $region63: #{tpu_custom_call.1} parent=0 // pred_check_branch
    %649 = sbr.rel (0) target = $region65
  $region64: #{tpu_custom_call.1} parent=0 // pred_region
    _
  $region65: #{tpu_custom_call.1} parent=0 // pred_fallthru
    _

</llo_original>
